<compile_context>
chip_gen: v7x
topology: tpu7x:2x2x1
jax: 0.10.0
libtpu: 0.0.40
codegen_flags: <defaults>
</compile_context>

<pallas_src>
import jax
import jax.numpy as jnp
from jax.experimental import pallas as pl
from jax.experimental.pallas import tpu as pltpu


def film_kernel(x_ref, gamma_ref, beta_ref,
                w1_ref, b1_ref,        # conv1: (Cimm, Cin), (Cimm, 1)
                w2_ref, b2_ref,        # conv2: (Cout, Cimm), (Cout, 1)
                o_ref):
    # x tile: (Cin, THW) for the current (batch, spatial-tile) grid point.
    x = x_ref[0]

    # conv1 (1x1) + relu -> (Cimm, THW)
    h = jnp.dot(w1_ref[...], x, preferred_element_type=jnp.float32) + b1_ref[...]
    h = jnp.maximum(h, 0.0)

    # conv2 (1x1) -> (Cout, THW)
    z = jnp.dot(w2_ref[...], h, preferred_element_type=jnp.float32) + b2_ref[...]

    # FiLM modulation; gamma/beta are precomputed in the wrapper, shape (Cout, 1)
    out = jnp.maximum(z * gamma_ref[0] + beta_ref[0], 0.0)
    o_ref[0] = out.astype(o_ref.dtype)


def _pick_spatial_tile(HW):
    """Spatial tile (columns of the channel-first block).

    Small images stay a single block per batch element (per-grid-step overhead
    ~0.35us would dominate). Large images get the largest multiple-of-128
    divisor of HW up to 2048 so the pipeline has tiles to overlap and the
    block fits generation-specific VMEM budgets.
    """
    if HW <= 2048:
        return HW
    for t in range(2048, 127, -128):
        if HW % t == 0:
            return t
    return HW  # awkward HW: fall back to one block per batch element


def film_forward(x_nchw, y, params):
    """x_nchw: (N, Cin, H, W), y: (N, F). Returns (N, Cout, H, W)."""
    N, Cin, H, W = x_nchw.shape
    w1, b1, w2, b2, wg, bg, wb, bb = params
    Cimm = w1.shape[0]
    Cout = w2.shape[0]
    HW = H * W
    THW = _pick_spatial_tile(HW)
    num_t = HW // THW

    # NCHW -> (N, Cin, H*W): pure contiguous reshape, no transpose needed.
    x_flat = x_nchw.reshape(N, Cin, HW)

    # Hoist the FiLM-parameter linears (M=1 MXU work) out of the kernel.
    gamma = (y @ wg.T + bg).astype(jnp.float32).reshape(N, Cout, 1)
    beta = (y @ wb.T + bb).astype(jnp.float32).reshape(N, Cout, 1)

    b1_2d = b1.reshape(Cimm, 1)
    b2_2d = b2.reshape(Cout, 1)

    # VMEM budget estimate: double-buffered x/out tiles + f32 intermediates +
    # resident weights, with 2x headroom, capped so it also fits v7x (64 MiB).
    itemsize = x_nchw.dtype.itemsize
    vmem_est = (2 * THW * (Cin + Cout) * itemsize
                + THW * (Cimm + Cout) * 4
                + 2 * (Cimm * Cin + Cout * Cimm + Cimm + Cout + 2 * Cout) * 4)
    vmem_limit = int(min(max(2 * vmem_est, 32 * 1024 * 1024), 64 * 1024 * 1024))

    def full_spec(shape):
        return pl.BlockSpec(shape, lambda n, t: (0,) * len(shape))

    out_flat = pl.pallas_call(
        film_kernel,
        out_shape=jax.ShapeDtypeStruct((N, Cout, HW), x_nchw.dtype),
        grid_spec=pltpu.PrefetchScalarGridSpec(
            num_scalar_prefetch=0,
            grid=(N, num_t),
            in_specs=[
                pl.BlockSpec((1, Cin, THW), lambda n, t: (n, 0, t)),   # x
                pl.BlockSpec((1, Cout, 1), lambda n, t: (n, 0, 0)),    # gamma
                pl.BlockSpec((1, Cout, 1), lambda n, t: (n, 0, 0)),    # beta
                full_spec((Cimm, Cin)),                                # w1
                full_spec((Cimm, 1)),                                  # b1
                full_spec((Cout, Cimm)),                               # w2
                full_spec((Cout, 1)),                                  # b2
            ],
            out_specs=pl.BlockSpec((1, Cout, THW), lambda n, t: (n, 0, t)),
        ),
        compiler_params=pltpu.CompilerParams(
            dimension_semantics=("parallel", "parallel"),
            vmem_limit_bytes=vmem_limit),
    )(x_flat, gamma, beta, w1, b1_2d, w2, b2_2d)

    # (N, Cout, H*W) -> NCHW: free reshape.
    return out_flat.reshape(N, Cout, H, W)


def init_params(key, in_features, out_features, in_channels, imm_channels):
    """Deterministic synthetic init mirroring the module's __init__ shapes.

    Weights kept in PyTorch-native (out, in) layout. Linear layers follow
    `initialize_parameters`: weight ~ N(0,1) row-normalized, bias = 0. Conv
    weights get a small deterministic normal init.
    """
    k1, k2, k3, k4 = jax.random.split(key, 4)

    # 1x1 convs: PyTorch weight (out, in, 1, 1) -> (out, in)
    w1 = (jax.random.normal(k1, (imm_channels, in_channels), jnp.float32)
          * (1.0 / jnp.sqrt(in_channels)))
    b1 = jnp.zeros((imm_channels,), jnp.float32)
    w2 = (jax.random.normal(k2, (out_features, imm_channels), jnp.float32)
          * (1.0 / jnp.sqrt(imm_channels)))
    b2 = jnp.zeros((out_features,), jnp.float32)

    # Linear layers: weight (out, in) ~ N(0,1), row-normalized; bias = 0
    def normed_linear(k):
        w = jax.random.normal(k, (out_features, in_features), jnp.float32)
        return w / jnp.sqrt(jnp.sum(w * w, axis=1, keepdims=True))

    wg = normed_linear(k3)
    bg = jnp.zeros((out_features,), jnp.float32)
    wb = normed_linear(k4)
    bb = jnp.zeros((out_features,), jnp.float32)

    return (w1, b1, w2, b2, wg, bg, wb, bb)


def film_reference(x_nchw, y, params):
    """Pure-JAX reference matching the PyTorch forward."""
    w1, b1, w2, b2, wg, bg, wb, bb = params
    h = jnp.maximum(jnp.einsum('nchw,dc->ndhw', x_nchw, w1)
                    + b1[None, :, None, None], 0.0)
    z = jnp.einsum('ndhw,ed->nehw', h, w2) + b2[None, :, None, None]
    gamma = (y @ wg.T + bg)[:, :, None, None]
    beta = (y @ wb.T + bb)[:, :, None, None]
    return jnp.maximum(z * gamma + beta, 0.0)


if __name__ == "__main__":
    # Small shapes consistent with the module's forward
    N, Cin, H, W = 2, 4, 16, 16
    in_features, imm_channels, out_features = 32, 8, 16

    key = jax.random.PRNGKey(0)
    kx, ky, kp = jax.random.split(key, 3)
    x = jax.random.normal(kx, (N, Cin, H, W), jnp.float32)
    y = jax.random.normal(ky, (N, in_features), jnp.float32)
    params = init_params(kp, in_features, out_features, Cin, imm_channels)

    out = film_forward(x, y, params)
    out = jax.block_until_ready(out)

    ref = film_reference(x, y, params)
    assert out.shape == (N, out_features, H, W)
    assert jnp.allclose(out, ref, atol=1e-4, rtol=1e-4)

    print("KERNEL_OK")
</pallas_src>

<mosaic_0001>
module attributes {stable_mosaic.version = 11 : i64} {
  func.func @film_kernel(%arg0: i32, %arg1: i32, %arg2: memref<1x4x256xf32, #tpu.memory_space<vmem>>, %arg3: memref<1x16x1xf32, #tpu.memory_space<vmem>>, %arg4: memref<1x16x1xf32, #tpu.memory_space<vmem>>, %arg5: memref<8x4xf32, #tpu.memory_space<vmem>>, %arg6: memref<8x1xf32, #tpu.memory_space<vmem>>, %arg7: memref<16x8xf32, #tpu.memory_space<vmem>>, %arg8: memref<16x1xf32, #tpu.memory_space<vmem>>, %arg9: memref<1x16x256xf32, #tpu.memory_space<vmem>>) attributes {dimension_semantics = [#tpu.dimension_semantics<parallel>, #tpu.dimension_semantics<parallel>], iteration_bounds = array<i64: 2, 1>, scalar_prefetch = 0 : i64, scratch_operands = 0 : i64, tpu.core_type = #tpu.core_type<tc>, window_params = [{transform_indices = @transform_0, window_bounds = array<i64: 1, 4, 256>}, {transform_indices = @transform_1, window_bounds = array<i64: 1, 16, 1>}, {transform_indices = @transform_2, window_bounds = array<i64: 1, 16, 1>}, {pipeline_mode = #tpu.pipeline_mode<synchronous>, transform_indices = @transform_3, window_bounds = array<i64: 8, 4>}, {pipeline_mode = #tpu.pipeline_mode<synchronous>, transform_indices = @transform_4, window_bounds = array<i64: 8, 1>}, {pipeline_mode = #tpu.pipeline_mode<synchronous>, transform_indices = @transform_5, window_bounds = array<i64: 16, 8>}, {pipeline_mode = #tpu.pipeline_mode<synchronous>, transform_indices = @transform_6, window_bounds = array<i64: 16, 1>}, {transform_indices = @transform_7, window_bounds = array<i64: 1, 16, 256>}]} {
    %c0 = arith.constant 0 : index
    %c0_0 = arith.constant 0 : index
    %c0_1 = arith.constant 0 : index
    %0 = vector.load %arg2[%c0, %c0_0, %c0_1] : memref<1x4x256xf32, #tpu.memory_space<vmem>>, vector<1x4x256xf32>
    %1 = vector.shape_cast %0 : vector<1x4x256xf32> to vector<4x256xf32>
    %c0_2 = arith.constant 0 : index
    %c0_3 = arith.constant 0 : index
    %2 = vector.load %arg5[%c0_2, %c0_3] : memref<8x4xf32, #tpu.memory_space<vmem>>, vector<8x4xf32>
    %cst = arith.constant dense<0.000000e+00> : vector<8x256xf32>
    %3 = tpu.matmul %2, %1, %cst {dimension_numbers = #tpu.dot_dimension_numbers<[1], [0], [0], [1], [0, 0, 1, 1], [], []>} : vector<8x4xf32>, vector<4x256xf32>, vector<8x256xf32> -> vector<8x256xf32>
    %c0_4 = arith.constant 0 : index
    %c0_5 = arith.constant 0 : index
    %4 = vector.load %arg6[%c0_4, %c0_5] : memref<8x1xf32, #tpu.memory_space<vmem>>, vector<8x1xf32>
    %5 = vector.broadcast %4 : vector<8x1xf32> to vector<8x256xf32>
    %6 = arith.addf %3, %5 : vector<8x256xf32>
    %cst_6 = arith.constant 0.000000e+00 : f32
    %7 = vector.broadcast %cst_6 : f32 to vector<8x256xf32>
    %8 = arith.maximumf %6, %7 : vector<8x256xf32>
    %c0_7 = arith.constant 0 : index
    %c0_8 = arith.constant 0 : index
    %9 = vector.load %arg7[%c0_7, %c0_8] : memref<16x8xf32, #tpu.memory_space<vmem>>, vector<16x8xf32>
    %cst_9 = arith.constant dense<0.000000e+00> : vector<16x256xf32>
    %10 = tpu.matmul %9, %8, %cst_9 {dimension_numbers = #tpu.dot_dimension_numbers<[1], [0], [0], [1], [0, 0, 1, 1], [], []>} : vector<16x8xf32>, vector<8x256xf32>, vector<16x256xf32> -> vector<16x256xf32>
    %c0_10 = arith.constant 0 : index
    %c0_11 = arith.constant 0 : index
    %11 = vector.load %arg8[%c0_10, %c0_11] : memref<16x1xf32, #tpu.memory_space<vmem>>, vector<16x1xf32>
    %12 = vector.broadcast %11 : vector<16x1xf32> to vector<16x256xf32>
    %13 = arith.addf %10, %12 : vector<16x256xf32>
    %c0_12 = arith.constant 0 : index
    %c0_13 = arith.constant 0 : index
    %c0_14 = arith.constant 0 : index
    %14 = vector.load %arg3[%c0_12, %c0_13, %c0_14] : memref<1x16x1xf32, #tpu.memory_space<vmem>>, vector<1x16x1xf32>
    %15 = vector.shape_cast %14 : vector<1x16x1xf32> to vector<16x1xf32>
    %16 = vector.broadcast %15 : vector<16x1xf32> to vector<16x256xf32>
    %17 = arith.mulf %13, %16 : vector<16x256xf32>
    %c0_15 = arith.constant 0 : index
    %c0_16 = arith.constant 0 : index
    %c0_17 = arith.constant 0 : index
    %18 = vector.load %arg4[%c0_15, %c0_16, %c0_17] : memref<1x16x1xf32, #tpu.memory_space<vmem>>, vector<1x16x1xf32>
    %19 = vector.shape_cast %18 : vector<1x16x1xf32> to vector<16x1xf32>
    %20 = vector.broadcast %19 : vector<16x1xf32> to vector<16x256xf32>
    %21 = arith.addf %17, %20 : vector<16x256xf32>
    %cst_18 = arith.constant 0.000000e+00 : f32
    %22 = vector.broadcast %cst_18 : f32 to vector<16x256xf32>
    %23 = arith.maximumf %21, %22 : vector<16x256xf32>
    %c0_19 = arith.constant 0 : index
    %c0_20 = arith.constant 0 : index
    %c0_21 = arith.constant 0 : index
    %24 = vector.load %arg9[%c0_19, %c0_20, %c0_21] : memref<1x16x256xf32, #tpu.memory_space<vmem>>, vector<1x16x256xf32>
    %25 = vector.shape_cast %24 : vector<1x16x256xf32> to vector<16x256xf32>
    %26 = vector.shape_cast %23 : vector<16x256xf32> to vector<1x16x256xf32>
    tpu.vector_store %arg9[%c0_19, %c0_20, %c0_21], %26 {strides = array<i32>} : memref<1x16x256xf32, #tpu.memory_space<vmem>>, vector<1x16x256xf32>,
    return
  }
  func.func @transform_0(%arg0: i32, %arg1: i32) -> (i32, i32, i32) {
    %c0_i32 = arith.constant 0 : i32
    %c0_i32_0 = arith.constant 0 : i32
    return %arg0, %c0_i32, %arg1 : i32, i32, i32
  }
  func.func @transform_1(%arg0: i32, %arg1: i32) -> (i32, i32, i32) {
    %c0_i32 = arith.constant 0 : i32
    %c0_i32_0 = arith.constant 0 : i32
    %c0_i32_1 = arith.constant 0 : i32
    return %arg0, %c0_i32, %c0_i32_0 : i32, i32, i32
  }
  func.func @transform_2(%arg0: i32, %arg1: i32) -> (i32, i32, i32) {
    %c0_i32 = arith.constant 0 : i32
    %c0_i32_0 = arith.constant 0 : i32
    %c0_i32_1 = arith.constant 0 : i32
    return %arg0, %c0_i32, %c0_i32_0 : i32, i32, i32
  }
  func.func @transform_3(%arg0: i32, %arg1: i32) -> (i32, i32) {
    %c0_i32 = arith.constant 0 : i32
    %c0_i32_0 = arith.constant 0 : i32
    %c0_i32_1 = arith.constant 0 : i32
    return %c0_i32, %c0_i32_0 : i32, i32
  }
  func.func @transform_4(%arg0: i32, %arg1: i32) -> (i32, i32) {
    %c0_i32 = arith.constant 0 : i32
    %c0_i32_0 = arith.constant 0 : i32
    %c0_i32_1 = arith.constant 0 : i32
    return %c0_i32, %c0_i32_0 : i32, i32
  }
  func.func @transform_5(%arg0: i32, %arg1: i32) -> (i32, i32) {
    %c0_i32 = arith.constant 0 : i32
    %c0_i32_0 = arith.constant 0 : i32
    %c0_i32_1 = arith.constant 0 : i32
    return %c0_i32, %c0_i32_0 : i32, i32
  }
  func.func @transform_6(%arg0: i32, %arg1: i32) -> (i32, i32) {
    %c0_i32 = arith.constant 0 : i32
    %c0_i32_0 = arith.constant 0 : i32
    %c0_i32_1 = arith.constant 0 : i32
    return %c0_i32, %c0_i32_0 : i32, i32
  }
  func.func @transform_7(%arg0: i32, %arg1: i32) -> (i32, i32, i32) {
    %c0_i32 = arith.constant 0 : i32
    %c0_i32_0 = arith.constant 0 : i32
    return %arg0, %c0_i32, %arg1 : i32, i32, i32
  }
}

</mosaic_0001>

<llo_original>
// kernel: tpu_custom_call.1
$region0: #{tpu_custom_call.1}
  #allocation0 [shape = 'u32[]', space=smem, size = 0x4, offset = 0x4, fixed_abs, tag = 'smem constant byte address 0x4 - core index']
  #allocation1 [shape = 'u32[144,128]{1,0:T(1,128)}', space=vmem, size = 0x12000, scoped, tag = 'internal scratch']
  %s0 = inlined_call_operand.vmem [shape: f32[2,4,256], index: 0, kind: input, shape index: {}]
  %s1 = inlined_call_operand.vmem [shape: f32[2,16,1], index: 1, kind: input, shape index: {}]
  %s2 = inlined_call_operand.vmem [shape: f32[2,16,1], index: 2, kind: input, shape index: {}]
  %s3 = inlined_call_operand.vmem [shape: f32[8,4], index: 3, kind: input, shape index: {}]
  %s4 = inlined_call_operand.vmem [shape: f32[8,1], index: 4, kind: input, shape index: {}]
  %s5 = inlined_call_operand.vmem [shape: f32[16,8], index: 5, kind: input, shape index: {}]
  %s6 = inlined_call_operand.vmem [shape: f32[16,1], index: 6, kind: input, shape index: {}]
  %s7 = inlined_call_operand.hbm [shape: f32[2,16,256], index: 7, kind: output, shape index: {}]
  %s8 = sld [smem:[#allocation0]]
  $region61: #{tpu_custom_call.1} parent=0
    _
  %s10 = ssub.s32 1, %s8
  %s11 = scalar_select 0, %s10, %s8
  $region1: #{tpu_custom_call.1} parent=0
    #allocation2 [shape = 'u8[32768]{0}', space=vmem, size = 0x8000, scoped, tag = 'output window, operand 0']
    #allocation3 [shape = 's32[2]{0}', space=sflag, size = 0x8, scoped, tag = 'scoped memory for tpu_custom_call.1']
    %12 = vsyncpa [#allocation3], 0
    %s13 = scalar_lea.sflag [#allocation3], 1
    %14 = vsyncpa %s13, 0
    loop: start=0, step=1, limit=4
    $region2: #{tpu_custom_call.1} parent=1 // loop_pre_header
      _
    $region3: #{tpu_custom_call.1} parent=1 // loop_header
      %s16 = sphi 0, %s20
      %p17 = scmp.ge.s32.totalorder %s16, 4
      %s23 = sphi 0, %s35
      %s24 = sphi 0, %s31
      %s25 = sphi 0, %s23
      %s26 = sphi 0, %s24
      %s27 = sphi 0, %s25
      %s28 = sphi 0, %s26
      %s40 = sphi 0, %s42
      %s43 = sphi 0, %s40
      %s44 = sphi 0, %s43
      %s60 = sphi 0, %s44
      %s66 = sphi 0, %s68
      %s69 = sphi 0, %s66
      %s70 = sphi 0, %s69
      %s86 = sphi 0, %s70
      %s92 = sphi 0, %s94
      %s95 = sphi 0, %s92
      %s96 = sphi 0, %s95
      %s112 = sphi 0, %s96
      %s116 = sphi 0, %s116
      %s118 = sphi 0, %s116
      %s119 = sphi 0, %s118
      %s133 = sphi 0, %s119
      %s137 = sphi 0, %s137
      %s139 = sphi 0, %s137
      %s140 = sphi 0, %s139
      %s154 = sphi 0, %s140
      %s158 = sphi 0, %s158
      %s160 = sphi 0, %s158
      %s161 = sphi 0, %s160
      %s175 = sphi 0, %s161
      %s179 = sphi 0, %s179
      %s181 = sphi 0, %s179
      %s182 = sphi 0, %s181
      %s196 = sphi 0, %s182
      %s204 = sphi 0, %s206
      %s207 = sphi 0, %s204
      %s208 = sphi 0, %s207
      %s224 = sphi 0, %s208
    $region4: #{tpu_custom_call.1} parent=1 // loop_header_branch
      %19 = sbr.rel (%p17) target = $region8
    $region5: #{tpu_custom_call.1} parent=1 // loop_body
      %s21 = ssub.s32 %s16, 1
      %s22 = ssub.s32 %s16, 2
      %s29 = sadd.s32 1, %s24
      %p30 = scmp.ge.s32.totalorder %s29, 1
      %s31 = scalar_select %p30, 0, %s29
      %s32 = sadd.s32 1, %s23
      %s33 = scalar_select %p30, %s32, %s23
      %p34 = scmp.ge.s32.totalorder %s33, 2
      %s35 = scalar_select %p34, 0, %s33
      %s36 = ssub.s32 %s23, %s35
      %s37 = ssub.s32 %s24, %s31
      %s38 = sor.u32 %s36, %s37
      %p39 = scmp.eq.s32.totalorder %s38, 0
      %s41 = sadd.s32 %s40, 1
      %s42 = scalar_select %p39, %s40, %s41
      %p45 = pneg %p39
      %p46 = scmp.eq.s32.totalorder %s16, 1
      %p47 = por %p45, %p46
      %p48 = scmp.ne.s32.totalorder %s40, %s43
      %p49 = scmp.eq.s32.totalorder %s16, 0
      %p50 = por %p48, %p49
      %p51 = scmp.ne.s32.totalorder %s40, %s43
      %p52 = scmp.eq.s32.totalorder %s21, 1
      %p53 = por %p51, %p52
      %p54 = scmp.ne.s32.totalorder %s43, %s44
      %p55 = scmp.eq.s32.totalorder %s21, 0
      %p56 = por %p54, %p55
      %p57 = scmp.ne.s32.totalorder %s43, %s44
      %p58 = scmp.eq.s32.totalorder %s22, 1
      %p59 = por %p57, %p58
      %p61 = scmp.ne.s32.totalorder %s44, %s60
      %p62 = scmp.eq.s32.totalorder %s22, 0
      %p63 = por %p61, %p62
      %s64 = ssub.s32 %s23, %s35
      %p65 = scmp.eq.s32.totalorder %s64, 0
      %s67 = sadd.s32 %s66, 1
      %s68 = scalar_select %p65, %s66, %s67
      %p71 = pneg %p65
      %p72 = scmp.eq.s32.totalorder %s16, 1
      %p73 = por %p71, %p72
      %p74 = scmp.ne.s32.totalorder %s66, %s69
      %p75 = scmp.eq.s32.totalorder %s16, 0
      %p76 = por %p74, %p75
      %p77 = scmp.ne.s32.totalorder %s66, %s69
      %p78 = scmp.eq.s32.totalorder %s21, 1
      %p79 = por %p77, %p78
      %p80 = scmp.ne.s32.totalorder %s69, %s70
      %p81 = scmp.eq.s32.totalorder %s21, 0
      %p82 = por %p80, %p81
      %p83 = scmp.ne.s32.totalorder %s69, %s70
      %p84 = scmp.eq.s32.totalorder %s22, 1
      %p85 = por %p83, %p84
      %p87 = scmp.ne.s32.totalorder %s70, %s86
      %p88 = scmp.eq.s32.totalorder %s22, 0
      %p89 = por %p87, %p88
      %s90 = ssub.s32 %s23, %s35
      %p91 = scmp.eq.s32.totalorder %s90, 0
      %s93 = sadd.s32 %s92, 1
      %s94 = scalar_select %p91, %s92, %s93
      %p97 = pneg %p91
      %p98 = scmp.eq.s32.totalorder %s16, 1
      %p99 = por %p97, %p98
      %p100 = scmp.ne.s32.totalorder %s92, %s95
      %p101 = scmp.eq.s32.totalorder %s16, 0
      %p102 = por %p100, %p101
      %p103 = scmp.ne.s32.totalorder %s92, %s95
      %p104 = scmp.eq.s32.totalorder %s21, 1
      %p105 = por %p103, %p104
      %p106 = scmp.ne.s32.totalorder %s95, %s96
      %p107 = scmp.eq.s32.totalorder %s21, 0
      %p108 = por %p106, %p107
      %p109 = scmp.ne.s32.totalorder %s95, %s96
      %p110 = scmp.eq.s32.totalorder %s22, 1
      %p111 = por %p109, %p110
      %p113 = scmp.ne.s32.totalorder %s96, %s112
      %p114 = scmp.eq.s32.totalorder %s22, 0
      %p115 = por %p113, %p114
      %s117 = sadd.s32 %s116, 1
      %p120 = scmp.eq.s32.totalorder %s16, 1
      %p121 = scmp.ne.s32.totalorder %s116, %s118
      %p122 = scmp.eq.s32.totalorder %s16, 0
      %p123 = por %p121, %p122
      %p124 = scmp.ne.s32.totalorder %s116, %s118
      %p125 = scmp.eq.s32.totalorder %s21, 1
      %p126 = por %p124, %p125
      %p127 = scmp.ne.s32.totalorder %s118, %s119
      %p128 = scmp.eq.s32.totalorder %s21, 0
      %p129 = por %p127, %p128
      %p130 = scmp.ne.s32.totalorder %s118, %s119
      %p131 = scmp.eq.s32.totalorder %s22, 1
      %p132 = por %p130, %p131
      %p134 = scmp.ne.s32.totalorder %s119, %s133
      %p135 = scmp.eq.s32.totalorder %s22, 0
      %p136 = por %p134, %p135
      %s138 = sadd.s32 %s137, 1
      %p141 = scmp.eq.s32.totalorder %s16, 1
      %p142 = scmp.ne.s32.totalorder %s137, %s139
      %p143 = scmp.eq.s32.totalorder %s16, 0
      %p144 = por %p142, %p143
      %p145 = scmp.ne.s32.totalorder %s137, %s139
      %p146 = scmp.eq.s32.totalorder %s21, 1
      %p147 = por %p145, %p146
      %p148 = scmp.ne.s32.totalorder %s139, %s140
      %p149 = scmp.eq.s32.totalorder %s21, 0
      %p150 = por %p148, %p149
      %p151 = scmp.ne.s32.totalorder %s139, %s140
      %p152 = scmp.eq.s32.totalorder %s22, 1
      %p153 = por %p151, %p152
      %p155 = scmp.ne.s32.totalorder %s140, %s154
      %p156 = scmp.eq.s32.totalorder %s22, 0
      %p157 = por %p155, %p156
      %s159 = sadd.s32 %s158, 1
      %p162 = scmp.eq.s32.totalorder %s16, 1
      %p163 = scmp.ne.s32.totalorder %s158, %s160
      %p164 = scmp.eq.s32.totalorder %s16, 0
      %p165 = por %p163, %p164
      %p166 = scmp.ne.s32.totalorder %s158, %s160
      %p167 = scmp.eq.s32.totalorder %s21, 1
      %p168 = por %p166, %p167
      %p169 = scmp.ne.s32.totalorder %s160, %s161
      %p170 = scmp.eq.s32.totalorder %s21, 0
      %p171 = por %p169, %p170
      %p172 = scmp.ne.s32.totalorder %s160, %s161
      %p173 = scmp.eq.s32.totalorder %s22, 1
      %p174 = por %p172, %p173
      %p176 = scmp.ne.s32.totalorder %s161, %s175
      %p177 = scmp.eq.s32.totalorder %s22, 0
      %p178 = por %p176, %p177
      %s180 = sadd.s32 %s179, 1
      %p183 = scmp.eq.s32.totalorder %s16, 1
      %p184 = scmp.ne.s32.totalorder %s179, %s181
      %p185 = scmp.eq.s32.totalorder %s16, 0
      %p186 = por %p184, %p185
      %p187 = scmp.ne.s32.totalorder %s179, %s181
      %p188 = scmp.eq.s32.totalorder %s21, 1
      %p189 = por %p187, %p188
      %p190 = scmp.ne.s32.totalorder %s181, %s182
      %p191 = scmp.eq.s32.totalorder %s21, 0
      %p192 = por %p190, %p191
      %p193 = scmp.ne.s32.totalorder %s181, %s182
      %p194 = scmp.eq.s32.totalorder %s22, 1
      %p195 = por %p193, %p194
      %p197 = scmp.ne.s32.totalorder %s182, %s196
      %p198 = scmp.eq.s32.totalorder %s22, 0
      %p199 = por %p197, %p198
      %s200 = ssub.s32 %s23, %s35
      %s201 = ssub.s32 %s24, %s31
      %s202 = sor.u32 %s200, %s201
      %p203 = scmp.eq.s32.totalorder %s202, 0
      %s205 = sadd.s32 %s204, 1
      %s206 = scalar_select %p203, %s204, %s205
      %p209 = pneg %p203
      %p210 = scmp.eq.s32.totalorder %s16, 1
      %p211 = por %p209, %p210
      %p212 = scmp.ne.s32.totalorder %s204, %s207
      %p213 = scmp.eq.s32.totalorder %s16, 0
      %p214 = por %p212, %p213
      %p215 = scmp.ne.s32.totalorder %s204, %s207
      %p216 = scmp.eq.s32.totalorder %s21, 1
      %p217 = por %p215, %p216
      %p218 = scmp.ne.s32.totalorder %s207, %s208
      %p219 = scmp.eq.s32.totalorder %s21, 0
      %p220 = por %p218, %p219
      %p221 = scmp.ne.s32.totalorder %s207, %s208
      %p222 = scmp.eq.s32.totalorder %s22, 1
      %p223 = por %p221, %p222
      %p225 = scmp.ne.s32.totalorder %s208, %s224
      %p226 = scmp.eq.s32.totalorder %s22, 0
      %p227 = por %p225, %p226
      %p228 = scmp.le.s32.totalorder 1, %s16
      %p229 = scmp.lt.s32.totalorder %s16, 3
      %p230 = pnand %p228, %p229
      %p231 = pneg %p230
      // Predicated region
      $region9: #{tpu_custom_call.1} parent=5 // pred_check
        _
      $region10: #{tpu_custom_call.1} parent=5 // pred_check_branch
        %233 = sbr.rel (%p230) target = $region12
      $region11: #{tpu_custom_call.1} parent=5 // pred_region
        %s234 = ssub.s32 %s16, 1
        // Predicated region
        $region13: #{tpu_custom_call.1} parent=11 // pred_check
          %p235 = pneg %p129
        $region14: #{tpu_custom_call.1} parent=11 // pred_check_branch
          %237 = sbr.rel (%p235) target = $region16
        $region15: #{tpu_custom_call.1} parent=11 // pred_region
          _
        $region16: #{tpu_custom_call.1} parent=11 // pred_fallthru
          _
        // Predicated region
        $region17: #{tpu_custom_call.1} parent=11 // pred_check
          %p238 = pneg %p150
        $region18: #{tpu_custom_call.1} parent=11 // pred_check_branch
          %240 = sbr.rel (%p238) target = $region20
        $region19: #{tpu_custom_call.1} parent=11 // pred_region
          _
        $region20: #{tpu_custom_call.1} parent=11 // pred_fallthru
          _
        // Predicated region
        $region21: #{tpu_custom_call.1} parent=11 // pred_check
          %p241 = pneg %p171
        $region22: #{tpu_custom_call.1} parent=11 // pred_check_branch
          %243 = sbr.rel (%p241) target = $region24
        $region23: #{tpu_custom_call.1} parent=11 // pred_region
          _
        $region24: #{tpu_custom_call.1} parent=11 // pred_fallthru
          _
        // Predicated region
        $region25: #{tpu_custom_call.1} parent=11 // pred_check
          %p244 = pneg %p192
        $region26: #{tpu_custom_call.1} parent=11 // pred_check_branch
          %246 = sbr.rel (%p244) target = $region28
        $region27: #{tpu_custom_call.1} parent=11 // pred_region
          _
        $region28: #{tpu_custom_call.1} parent=11 // pred_fallthru
          _
      $region12: #{tpu_custom_call.1} parent=5 // pred_fallthru
        _
      %p247 = scmp.lt.s32.totalorder %s16, 2
      // Predicated region
      $region29: #{tpu_custom_call.1} parent=5 // pred_check
        %p248 = pneg %p247
      $region30: #{tpu_custom_call.1} parent=5 // pred_check_branch
        %250 = sbr.rel (%p248) target = $region32
      $region31: #{tpu_custom_call.1} parent=5 // pred_region
        // Predicated region
        $region33: #{tpu_custom_call.1} parent=31 // pred_check
          %p251 = pneg %p50
        $region34: #{tpu_custom_call.1} parent=31 // pred_check_branch
          %253 = sbr.rel (%p251) target = $region36
        $region35: #{tpu_custom_call.1} parent=31 // pred_region
          %s254 = smul.u32 2, %s24
          %p255 = scmp.lt.s32.totalorder %s23, 1
          %s256 = scalar_select %p255, %s23, 1
          %p257 = scmp.lt.s32.totalorder %s254, 1
          %s258 = scalar_select %p257, %s254, 1
          %s259 = smul.addr %s256, 2
          %s260 = sadd.s32 %s258, %s259
          %s261 = smul.addr %s260, 4
          %s262 = scalar_lea.vmem %s0, %s261
          %s263 = smul.u32 2, %s24
        $region36: #{tpu_custom_call.1} parent=31 // pred_fallthru
          _
        // Predicated region
        $region37: #{tpu_custom_call.1} parent=31 // pred_check
          %p264 = pneg %p76
        $region38: #{tpu_custom_call.1} parent=31 // pred_check_branch
          %266 = sbr.rel (%p264) target = $region40
        $region39: #{tpu_custom_call.1} parent=31 // pred_region
          %p267 = scmp.lt.s32.totalorder %s23, 1
          %s268 = scalar_select %p267, %s23, 1
          %s269 = smul.addr %s268, 2
          %s270 = smul.addr %s269, 8
          %s271 = scalar_lea.vmem %s1, %s270
        $region40: #{tpu_custom_call.1} parent=31 // pred_fallthru
          _
        // Predicated region
        $region41: #{tpu_custom_call.1} parent=31 // pred_check
          %p272 = pneg %p102
        $region42: #{tpu_custom_call.1} parent=31 // pred_check_branch
          %274 = sbr.rel (%p272) target = $region44
        $region43: #{tpu_custom_call.1} parent=31 // pred_region
          %p275 = scmp.lt.s32.totalorder %s23, 1
          %s276 = scalar_select %p275, %s23, 1
          %s277 = smul.addr %s276, 2
          %s278 = smul.addr %s277, 8
          %s279 = scalar_lea.vmem %s2, %s278
        $region44: #{tpu_custom_call.1} parent=31 // pred_fallthru
          _
      $region32: #{tpu_custom_call.1} parent=5 // pred_fallthru
        _
      %p280 = scmp.le.s32.totalorder 1, %s16
      %p281 = scmp.lt.s32.totalorder %s16, 3
      %p282 = pnand %p280, %p281
      %p283 = pneg %p282
      // Predicated region
      $region45: #{tpu_custom_call.1} parent=5 // pred_check
        _
      $region46: #{tpu_custom_call.1} parent=5 // pred_check_branch
        %285 = sbr.rel (%p282) target = $region48
      $region47: #{tpu_custom_call.1} parent=5 // pred_region
        %s286 = ssub.s32 %s16, 1
        %s287 = smul.u32 2, %s26
        %p288 = scmp.lt.s32.totalorder %s25, 1
        %s289 = scalar_select %p288, %s25, 1
        %p290 = scmp.lt.s32.totalorder %s287, 1
        %s291 = scalar_select %p290, %s287, 1
        %s292 = smul.addr %s289, 2
        %s293 = sadd.s32 %s291, %s292
        %s294 = smul.addr %s293, 4
        %s295 = scalar_lea.vmem %s0, %s294
        %p296 = pneg %p56
        %p297 = pneg %p53
        %p298 = scmp.lt.s32.totalorder %s25, 1
        %s299 = scalar_select %p298, %s25, 1
        %s300 = smul.addr %s299, 2
        %s301 = smul.addr %s300, 8
        %s302 = scalar_lea.vmem %s1, %s301
        %p303 = pneg %p82
        %p304 = pneg %p79
        %p305 = scmp.lt.s32.totalorder %s25, 1
        %s306 = scalar_select %p305, %s25, 1
        %s307 = smul.addr %s306, 2
        %s308 = smul.addr %s307, 8
        %s309 = scalar_lea.vmem %s2, %s308
        %p310 = pneg %p108
        %p311 = pneg %p105
        %p312 = pneg %p129
        %p313 = pneg %p126
        %p314 = pneg %p150
        %p315 = pneg %p147
        %p316 = pneg %p171
        %p317 = pneg %p168
        %p318 = pneg %p192
        %p319 = pneg %p189
        %p320 = pneg %p220
        %p321 = pneg %p217
        %s322 = sand.u32 %s207, 1
        %s323 = scalar_lea.sflag [#allocation3], %s322
        %s324 = sand.u32 %s207, 1
        %s325 = smul.addr %s324, 32
        %s326 = scalar_lea.vmem [#allocation2], %s325
        %s327 = smul.u32 2, %s26
        %p328 = scmp.lt.s32.totalorder %s25, 1
        %s329 = scalar_select %p328, %s25, 1
        %p330 = scmp.lt.s32.totalorder %s327, 1
        %s331 = scalar_select %p330, %s327, 1
        %s332 = smul.addr %s329, 2
        %s333 = sadd.s32 %s331, %s332
        %s334 = smul.addr %s333, 4
        %s335 = scalar_lea.vmem %s0, %s334
        %s336 = smul.u32 2, %s26
        %p337 = scmp.lt.s32.totalorder %s25, 1
        %s338 = scalar_select %p337, %s25, 1
        %s339 = smul.addr %s338, 2
        %s340 = smul.addr %s339, 8
        %s341 = scalar_lea.vmem %s1, %s340
        %p342 = scmp.lt.s32.totalorder %s25, 1
        %s343 = scalar_select %p342, %s25, 1
        %s344 = smul.addr %s343, 2
        %s345 = smul.addr %s344, 8
        %s346 = scalar_lea.vmem %s2, %s345
        %s347 = smul.u32 2, %s26
        %v348 = vld [vmem:[%s335] sm:$0xff]
        %v349 = vld [vmem:[%s3] sm:$0xff]
        %v350 = vld [vmem:[%s4] sm:$0xff]
        %352 = vset.pattern.permute.xlu0 0
        %353 = vperm.xlu0 %352, %v350
        %v354 = vpop.permute.xlu0 %353
        %v357 = vcombine.high %v348, %v348
        %vm358 = vcmask 31744
        %v360 = vsel %vm358, %v349, 0
        %vm362 = vcmask 1043456
        %v363 = vsel %vm362, %v348, 0
        %v365 = vsel %vm362, %v357, 0
        %367 = vmatprep.subr.mxu0 %v365
        %368 = vmatpush1.msra.mxu0 %v363
        %369 = vmatprep.subr.mxu0 0.0
        %370 = vmatpush1.msra.mxu0 0.0
        %371 = vmatprep.subr.mxu0 0.0
        %372 = vmatpush1.msra.mxu0 0.0
        %373 = vmatprep.subr.mxu0 0.0
        %374 = vmatpush1.msra.mxu0 0.0
        %375 = vmatprep.subr.mxu0 0.0
        %376 = vmatpush1.msra.mxu0 0.0
        %377 = vmatprep.subr.mxu0 0.0
        %378 = vmatpush1.msra.mxu0 0.0
        %379 = vmatprep.subr.mxu0 0.0
        %380 = vmatpush1.msra.mxu0 0.0
        %381 = vmatprep.subr.mxu0 0.0
        %382 = vmatpush1.msra.mxu0 0.0
        %383 = vmatprep.subr.mxu0 0.0
        %384 = vmatpush1.msra.mxu0 0.0
        %385 = vmatprep.subr.mxu0 0.0
        %386 = vmatpush1.msra.mxu0 0.0
        %387 = vmatprep.subr.mxu0 0.0
        %388 = vmatpush1.msra.mxu0 0.0
        %389 = vmatprep.subr.mxu0 0.0
        %390 = vmatpush1.msra.mxu0 0.0
        %391 = vmatprep.subr.mxu0 0.0
        %392 = vmatpush1.msra.mxu0 0.0
        %393 = vmatprep.subr.mxu0 0.0
        %394 = vmatpush1.msra.mxu0 0.0
        %395 = vmatprep.subr.mxu0 0.0
        %396 = vmatpush1.msra.mxu0 0.0
        %397 = vmatprep.subr.mxu0 0.0
        %398 = vmatpush1.msra.mxu0 0.0
        %399 = vmatprep.subr.mxu0 0.0
        %400 = vmatpush1.msra.mxu0 0.0
        %401 = vmatprep.subr.mxu0 0.0
        %402 = vmatpush1.msra.mxu0 0.0
        %403 = vmatprep.subr.mxu0 0.0
        %404 = vmatpush1.msra.mxu0 0.0
        %405 = vmatprep.subr.mxu0 0.0
        %406 = vmatpush1.msra.mxu0 0.0
        %407 = vmatprep.subr.mxu0 0.0
        %408 = vmatpush1.msra.mxu0 0.0
        %409 = vmatprep.subr.mxu0 0.0
        %410 = vmatpush1.msra.mxu0 0.0
        %411 = vmatprep.subr.mxu0 0.0
        %412 = vmatpush1.msra.mxu0 0.0
        %413 = vmatprep.subr.mxu0 0.0
        %414 = vmatpush1.msra.mxu0 0.0
        %415 = vmatprep.subr.mxu0 0.0
        %416 = vmatpush1.msra.mxu0 0.0
        %417 = vmatprep.subr.mxu0 0.0
        %418 = vmatpush1.msra.mxu0 0.0
        %419 = vmatprep.subr.mxu0 0.0
        %420 = vmatpush1.msra.mxu0 0.0
        %421 = vmatprep.subr.mxu0 0.0
        %422 = vmatpush1.msra.mxu0 0.0
        %423 = vmatprep.subr.mxu0 0.0
        %424 = vmatpush1.msra.mxu0 0.0
        %425 = vmatprep.subr.mxu0 0.0
        %426 = vmatpush1.msra.mxu0 0.0
        %427 = vmatprep.subr.mxu0 0.0
        %428 = vmatpush1.msra.mxu0 0.0
        %429 = vmatprep.subr.mxu0 0.0
        %430 = vmatpush1.msra.mxu0 0.0
        %431 = vmatprep.mubr.f32.mxu0 0.0
        %432 = vmatmul.mubr.f32.gmra.mrb[0].mxu0 %v360
        %v433 = vpop.f32.mrb[0].mxu0
        %v434 = vadd.f32 %v354, %v433
        %v435 = vpop.f32.mrb[0].mxu0
        %v436 = vadd.f32 %v354, %v435
        %437 = vdwg.mxu0
        %v438 = vmax.f32 %v434, 0.0
        %v439 = vmax.f32 %v436, 0.0
        %v440 = vld [vmem:[%s5] sm:$0xff]
        %v441 = vld [vmem:[%s5 + $0x8] sm:$0xff]
        %v442 = vld [vmem:[%s6] sm:$0xff]
        %v443 = vld [vmem:[%s6 + $0x8] sm:$0xff]
        %445 = vset.pattern.permute.xlu0 0
        %446 = vperm.xlu0 %445, %v442
        %v447 = vpop.permute.xlu0 %446
        %450 = vset.pattern.permute.xlu0 0
        %451 = vperm.xlu0 %450, %v443
        %v452 = vpop.permute.xlu0 %451
        %vm454 = vcmask 64512
        %v456 = vsel %vm454, %v440, 0
        %v459 = vsel %vm454, %v441, 0
        %461 = vmatprep.subr.mxu0 %v439
        %462 = vmatpush1.msra.mxu0 %v438
        %463 = vmatprep.subr.mxu0 0.0
        %464 = vmatpush1.msra.mxu0 0.0
        %465 = vmatprep.subr.mxu0 0.0
        %466 = vmatpush1.msra.mxu0 0.0
        %467 = vmatprep.subr.mxu0 0.0
        %468 = vmatpush1.msra.mxu0 0.0
        %469 = vmatprep.subr.mxu0 0.0
        %470 = vmatpush1.msra.mxu0 0.0
        %471 = vmatprep.subr.mxu0 0.0
        %472 = vmatpush1.msra.mxu0 0.0
        %473 = vmatprep.subr.mxu0 0.0
        %474 = vmatpush1.msra.mxu0 0.0
        %475 = vmatprep.subr.mxu0 0.0
        %476 = vmatpush1.msra.mxu0 0.0
        %477 = vmatprep.subr.mxu0 0.0
        %478 = vmatpush1.msra.mxu0 0.0
        %479 = vmatprep.subr.mxu0 0.0
        %480 = vmatpush1.msra.mxu0 0.0
        %481 = vmatprep.subr.mxu0 0.0
        %482 = vmatpush1.msra.mxu0 0.0
        %483 = vmatprep.subr.mxu0 0.0
        %484 = vmatpush1.msra.mxu0 0.0
        %485 = vmatprep.subr.mxu0 0.0
        %486 = vmatpush1.msra.mxu0 0.0
        %487 = vmatprep.subr.mxu0 0.0
        %488 = vmatpush1.msra.mxu0 0.0
        %489 = vmatprep.subr.mxu0 0.0
        %490 = vmatpush1.msra.mxu0 0.0
        %491 = vmatprep.subr.mxu0 0.0
        %492 = vmatpush1.msra.mxu0 0.0
        %493 = vmatprep.subr.mxu0 0.0
        %494 = vmatpush1.msra.mxu0 0.0
        %495 = vmatprep.subr.mxu0 0.0
        %496 = vmatpush1.msra.mxu0 0.0
        %497 = vmatprep.subr.mxu0 0.0
        %498 = vmatpush1.msra.mxu0 0.0
        %499 = vmatprep.subr.mxu0 0.0
        %500 = vmatpush1.msra.mxu0 0.0
        %501 = vmatprep.subr.mxu0 0.0
        %502 = vmatpush1.msra.mxu0 0.0
        %503 = vmatprep.subr.mxu0 0.0
        %504 = vmatpush1.msra.mxu0 0.0
        %505 = vmatprep.subr.mxu0 0.0
        %506 = vmatpush1.msra.mxu0 0.0
        %507 = vmatprep.subr.mxu0 0.0
        %508 = vmatpush1.msra.mxu0 0.0
        %509 = vmatprep.subr.mxu0 0.0
        %510 = vmatpush1.msra.mxu0 0.0
        %511 = vmatprep.subr.mxu0 0.0
        %512 = vmatpush1.msra.mxu0 0.0
        %513 = vmatprep.subr.mxu0 0.0
        %514 = vmatpush1.msra.mxu0 0.0
        %515 = vmatprep.subr.mxu0 0.0
        %516 = vmatpush1.msra.mxu0 0.0
        %517 = vmatprep.subr.mxu0 0.0
        %518 = vmatpush1.msra.mxu0 0.0
        %519 = vmatprep.subr.mxu0 0.0
        %520 = vmatpush1.msra.mxu0 0.0
        %521 = vmatprep.subr.mxu0 0.0
        %522 = vmatpush1.msra.mxu0 0.0
        %523 = vmatprep.subr.mxu0 0.0
        %524 = vmatpush1.msra.mxu0 0.0
        %525 = vmatprep.mubr.f32.mxu0 0.0
        %526 = vmatmul.mubr.f32.gmra.mrb[0].mxu0 %v456
        %v527 = vpop.f32.mrb[0].mxu0
        %v528 = vadd.f32 %v447, %v527
        %v529 = vpop.f32.mrb[0].mxu0
        %v530 = vadd.f32 %v447, %v529
        %531 = vmatprep.mubr.f32.mxu0 0.0
        %532 = vmatmul.mubr.f32.gmra.mrb[0].mxu0 %v459
        %v533 = vpop.f32.mrb[0].mxu0
        %v534 = vadd.f32 %v452, %v533
        %v535 = vpop.f32.mrb[0].mxu0
        %v536 = vadd.f32 %v452, %v535
        %537 = vdwg.mxu0
        %v538 = vld [vmem:[%s341] sm:$0xff]
        %v539 = vld [vmem:[%s341 + $0x8] sm:$0xff]
        %541 = vset.pattern.permute.xlu0 0
        %542 = vperm.xlu0 %541, %v538
        %v543 = vpop.permute.xlu0 %542
        %546 = vset.pattern.permute.xlu0 0
        %547 = vperm.xlu0 %546, %v539
        %v548 = vpop.permute.xlu0 %547
        %v550 = vmul.f32 %v528, %v543
        %v551 = vmul.f32 %v530, %v543
        %v552 = vmul.f32 %v534, %v548
        %v553 = vmul.f32 %v536, %v548
        %v554 = vld [vmem:[%s346] sm:$0xff]
        %v555 = vld [vmem:[%s346 + $0x8] sm:$0xff]
        %557 = vset.pattern.permute.xlu0 0
        %558 = vperm.xlu0 %557, %v554
        %v559 = vpop.permute.xlu0 %558
        %562 = vset.pattern.permute.xlu0 0
        %563 = vperm.xlu0 %562, %v555
        %v564 = vpop.permute.xlu0 %563
        %v566 = vadd.f32 %v550, %v559
        %v567 = vadd.f32 %v551, %v559
        %v568 = vadd.f32 %v552, %v564
        %v569 = vadd.f32 %v553, %v564
        %v570 = vmax.f32 %v566, 0.0
        %v571 = vmax.f32 %v567, 0.0
        %v572 = vmax.f32 %v568, 0.0
        %v573 = vmax.f32 %v569, 0.0
        %574 = vst [vmem:[%s326] sm:$0xff] %v570
        %575 = vst [vmem:[%s326 + $0x8] sm:$0xff] %v571
        %576 = vst [vmem:[%s326 + $0x10] sm:$0xff] %v572
        %577 = vst [vmem:[%s326 + $0x18] sm:$0xff] %v573
        %s578 = sand.u32 %s207, 1
        %s579 = scalar_lea.sflag [#allocation3], %s578
        %s580 = sand.u32 %s207, 1
        %s581 = smul.addr %s580, 32
        %s582 = scalar_lea.vmem [#allocation2], %s581
        // Predicated region
        $region49: #{tpu_custom_call.1} parent=47 // pred_check
          %p583 = pneg %p217
        $region50: #{tpu_custom_call.1} parent=47 // pred_check_branch
          %585 = sbr.rel (%p583) target = $region52
        $region51: #{tpu_custom_call.1} parent=47 // pred_region
          %s586 = smul.u32 2, %s26
          %s588 = ssub.s32 512, 512
          %589 = vsyncadd %s579, %s588
          %s590 = smul.addr %s25, 4
          %s591 = sadd.s32 %s586, %s590
          %s592 = smul.addr %s591, 128
          %s593 = scalar_lea.hbm %s7, %s592
          %s594 = sshll.u32 %s582, 4
          %s595 = int_to_ptr.vmem [resolvable:$true] %s594
          %600 = dma.vmem_to_hbm [thread:$0]  %s595, 512, %s593, %s579, 256, 256, 16
        $region52: #{tpu_custom_call.1} parent=47 // pred_fallthru
          _
      $region48: #{tpu_custom_call.1} parent=5 // pred_fallthru
        _
      %p601 = scmp.le.s32.totalorder 2, %s16
      // Predicated region
      $region53: #{tpu_custom_call.1} parent=5 // pred_check
        %p602 = pneg %p601
      $region54: #{tpu_custom_call.1} parent=5 // pred_check_branch
        %604 = sbr.rel (%p602) target = $region56
      $region55: #{tpu_custom_call.1} parent=5 // pred_region
        %s605 = ssub.s32 %s16, 2
        // Predicated region
        $region57: #{tpu_custom_call.1} parent=55 // pred_check
          %p606 = pneg %p223
        $region58: #{tpu_custom_call.1} parent=55 // pred_check_branch
          %608 = sbr.rel (%p606) target = $region60
        $region59: #{tpu_custom_call.1} parent=55 // pred_region
          %s609 = sand.u32 %s208, 1
          %s610 = scalar_lea.sflag [#allocation3], %s609
          %s611 = sand.u32 %s208, 1
          %s612 = smul.addr %s611, 32
          %s613 = scalar_lea.vmem [#allocation2], %s612
          %614 = dma.done %s610, 512
        $region60: #{tpu_custom_call.1} parent=55 // pred_fallthru
          _
      $region56: #{tpu_custom_call.1} parent=5 // pred_fallthru
        _
    $region6: #{tpu_custom_call.1} parent=1 // loop_footer
      %s20 = sadd.s32 1, %s16
    $region7: #{tpu_custom_call.1} parent=1 // loop_footer_branch
      %15 = sbr.rel target = $region3
    $region8: #{tpu_custom_call.1} parent=1 // loop_exit
      _
    %615 = vsyncpa [#allocation3], 1
    %s616 = scalar_lea.sflag [#allocation3], 1
    %617 = vsyncpa %s616, 1

</llo_original>
